<compile_context>
chip_gen: v5e
topology: v5e:2x2
jax: 0.10.0
libtpu: 0.0.40
codegen_flags: <defaults>
</compile_context>

<pallas_src>
import functools

import jax
import jax.numpy as jnp
from jax.experimental import pallas as pl
from jax.experimental.pallas import tpu as pltpu

EPS = 1e-8


def _round_up(a, b):
    return (a + b - 1) // b * b


def _vmem_capacity_bytes():
    try:
        return int(pltpu.get_tpu_info().vmem_capacity_bytes)
    except Exception:
        return 64 * 1024 * 1024  # conservative (v7x-sized per-TC) fallback


def _pick_row_tile(rows, max_rows):
    """Largest multiple of 8 <= max_rows that divides `rows` (rows % 8 == 0)."""
    tr = min(rows, max(8, (max_rows // 8) * 8))
    tr = (tr // 8) * 8
    while rows % tr != 0:
        tr -= 8
    # Prefer >= 2 grid steps when possible so the DMA pipeline has work to
    # overlap and both v7x TensorCores get something to do.
    if tr == rows and rows > 8:
        t = tr - 8
        while t >= 8 and rows % t != 0:
            t -= 8
        if t >= 8:
            tr = t
    return tr


# ---------------------------------------------------------------------------
# Path A: fused single-pass kernel (whole spatial volume of a row-tile in VMEM)
# ---------------------------------------------------------------------------
def _adain_fused_kernel(x_ref, mu_ref, sig_ref, o_ref, *, inv_n, inv_nm1):
    # x_ref: (tr, S); mu_ref / sig_ref: (tr, 1).
    x = x_ref[...].astype(jnp.float32)
    # Single-pass stats: sum and sum-of-squares in one sweep over the full,
    # unpadded spatial axis.
    s_sum = jnp.sum(x, axis=1, keepdims=True)
    s_sq = jnp.sum(x * x, axis=1, keepdims=True)
    mean = s_sum * inv_n
    var = (s_sq - mean * s_sum) * inv_nm1       # unbiased (ddof=1)
    std = jnp.sqrt(jnp.maximum(var, 0.0))

    denom = std + EPS
    r = pl.reciprocal(denom, approx=True)       # EUP slot (otherwise idle)
    r = r * (2.0 - denom * r)                   # one Newton step -> f32 accuracy
    scale = r * (sig_ref[...] + EPS)            # fold both muls into one scale
    o_ref[...] = ((x - mean) * scale + mu_ref[...]).astype(o_ref.dtype)


# ---------------------------------------------------------------------------
# Path B: two-pass, S-tiled (volumes whose full rows don't fit VMEM)
# ---------------------------------------------------------------------------
def _adain_stats_kernel(x_ref, mean_ref, std_ref, sum_acc, sq_acc, *, inv_n,
                        inv_nm1):
    j = pl.program_id(1)

    @pl.when(j == 0)
    def _():
        sum_acc[...] = jnp.zeros_like(sum_acc)
        sq_acc[...] = jnp.zeros_like(sq_acc)

    x = x_ref[...].astype(jnp.float32)
    sum_acc[...] += jnp.sum(x, axis=1, keepdims=True)
    sq_acc[...] += jnp.sum(x * x, axis=1, keepdims=True)

    @pl.when(j == pl.num_programs(1) - 1)
    def _():
        s_sum = sum_acc[...]
        mean = s_sum * inv_n
        var = (sq_acc[...] - mean * s_sum) * inv_nm1
        mean_ref[...] = mean
        std_ref[...] = jnp.sqrt(jnp.maximum(var, 0.0))


def _adain_norm_kernel(x_ref, mean_ref, std_ref, mu_ref, sig_ref, o_ref):
    x = x_ref[...].astype(jnp.float32)
    denom = std_ref[...] + EPS
    r = pl.reciprocal(denom, approx=True)
    r = r * (2.0 - denom * r)
    scale = r * (sig_ref[...] + EPS)
    o_ref[...] = ((x - mean_ref[...]) * scale + mu_ref[...]).astype(o_ref.dtype)


# ---------------------------------------------------------------------------
# Wrapper
# ---------------------------------------------------------------------------
@functools.partial(jax.jit, static_argnames=("vmem_budget_bytes",))
def adain(x, mu_y, sig_y, *, vmem_budget_bytes=None):
    """x: (N, C, D, H, W); mu_y, sig_y: (N, C). Returns same shape/dtype as x."""
    n, c, d, h, w = x.shape
    rows = n * c
    s = d * h * w

    cap = _vmem_capacity_bytes()
    if vmem_budget_bytes is None:
        # Keep the working set within ~half physical VMEM; this automatically
        # halves the tile on v7x (64 MiB/TC) vs v5e/v6e (128 MiB).
        budget = min(cap // 2, 48 * 1024 * 1024)
    else:
        budget = int(vmem_budget_bytes)
    vmem_limit = int(min(cap * 3 // 4,
                         max(32 * 1024 * 1024, budget + 32 * 1024 * 1024)))

    s_lane = _round_up(s, 128)   # internal VMEM lane footprint only
    inv_n = 1.0 / float(s)
    # TODO(synk): S == 1 gives NaN (matches torch.std with one element).
    inv_nm1 = (1.0 / float(s - 1)) if s > 1 else float("nan")

    x2 = x.reshape(rows, s)                       # free reshape (contiguous)
    mu1 = mu_y.reshape(rows).astype(jnp.float32)
    sig1 = sig_y.reshape(rows).astype(jnp.float32)

    # Per row of a full-S tile: (in + out) x double-buffer x 4 bytes.
    per_row_bytes = 16 * s_lane

    if 8 * per_row_bytes <= budget:
        # -------- Path A: fused single-pass, full spatial row per block -----
        # ~8 MiB x-blocks are plenty to saturate HBM; stay within budget.
        max_rows = min(budget // per_row_bytes,
                       max(8, (8 * 1024 * 1024) // (4 * s_lane)))

        if rows % 8 == 0:
            rows_work, tr = rows, _pick_row_tile(rows, max_rows)
            xw = x2
            muw = mu1.reshape(rows, 1)
            sigw = sig1.reshape(rows, 1)
        elif rows <= max_rows:
            # rows not a multiple of 8: one full-extent row block (always legal).
            rows_work, tr = rows, rows
            xw = x2
            muw = mu1.reshape(rows, 1)
            sigw = sig1.reshape(rows, 1)
        else:
            # Rare: many rows and rows % 8 != 0 — pad rows only (never lanes).
            rows_work = _round_up(rows, 8)
            tr = _pick_row_tile(rows_work, max_rows)
            pr = rows_work - rows
            xw = jnp.pad(x2, ((0, pr), (0, 0)))
            muw = jnp.pad(mu1, (0, pr)).reshape(rows_work, 1)
            sigw = jnp.pad(sig1, (0, pr)).reshape(rows_work, 1)

        out2 = pl.pallas_call(
            functools.partial(_adain_fused_kernel, inv_n=inv_n,
                              inv_nm1=inv_nm1),
            out_shape=jax.ShapeDtypeStruct((rows_work, s), x.dtype),
            grid_spec=pltpu.PrefetchScalarGridSpec(
                num_scalar_prefetch=0,
                grid=(rows_work // tr,),
                in_specs=[
                    pl.BlockSpec((tr, s), lambda i: (i, 0)),
                    pl.BlockSpec((tr, 1), lambda i: (i, 0)),
                    pl.BlockSpec((tr, 1), lambda i: (i, 0)),
                ],
                out_specs=pl.BlockSpec((tr, s), lambda i: (i, 0)),
            ),
            compiler_params=pltpu.CompilerParams(
                dimension_semantics=("parallel",),
                vmem_limit_bytes=vmem_limit),
        )(xw, muw, sigw)
        if rows_work > rows:
            out2 = out2[:rows]
        return out2.reshape(n, c, d, h, w)

    # -------- Path B: two-pass, S-tiled -------------------------------------
    rows8 = _round_up(rows, 8)
    ts = 2048
    while ts > 128 and 8 * 16 * ts > budget:
        ts //= 2
    tr = max(8, min(rows8, (budget // (16 * ts)) // 8 * 8))
    rows_pad = _round_up(rows, tr)
    s_pad = _round_up(s, ts)

    xp = x2
    if rows_pad > rows or s_pad > s:
        xp = jnp.pad(x2, ((0, rows_pad - rows), (0, s_pad - s)))
    mup = jnp.pad(mu1, (0, rows_pad - rows)).reshape(rows_pad, 1)
    sigp = jnp.pad(sig1, (0, rows_pad - rows)).reshape(rows_pad, 1)

    grid = (rows_pad // tr, s_pad // ts)

    mean_x, std_x = pl.pallas_call(
        functools.partial(_adain_stats_kernel, inv_n=inv_n, inv_nm1=inv_nm1),
        out_shape=(jax.ShapeDtypeStruct((rows_pad, 1), jnp.float32),
                   jax.ShapeDtypeStruct((rows_pad, 1), jnp.float32)),
        grid_spec=pltpu.PrefetchScalarGridSpec(
            num_scalar_prefetch=0,
            grid=grid,
            in_specs=[pl.BlockSpec((tr, ts), lambda i, j: (i, j))],
            out_specs=[pl.BlockSpec((tr, 1), lambda i, j: (i, 0)),
                       pl.BlockSpec((tr, 1), lambda i, j: (i, 0))],
            scratch_shapes=[pltpu.VMEM((tr, 1), jnp.float32),
                            pltpu.VMEM((tr, 1), jnp.float32)],
        ),
        compiler_params=pltpu.CompilerParams(
            dimension_semantics=("parallel", "arbitrary"),
            vmem_limit_bytes=vmem_limit),
    )(xp)

    out2 = pl.pallas_call(
        _adain_norm_kernel,
        out_shape=jax.ShapeDtypeStruct((rows_pad, s_pad), x.dtype),
        grid_spec=pltpu.PrefetchScalarGridSpec(
            num_scalar_prefetch=0,
            grid=grid,
            in_specs=[
                pl.BlockSpec((tr, ts), lambda i, j: (i, j)),
                pl.BlockSpec((tr, 1), lambda i, j: (i, 0)),
                pl.BlockSpec((tr, 1), lambda i, j: (i, 0)),
                pl.BlockSpec((tr, 1), lambda i, j: (i, 0)),
                pl.BlockSpec((tr, 1), lambda i, j: (i, 0)),
            ],
            out_specs=pl.BlockSpec((tr, ts), lambda i, j: (i, j)),
        ),
        compiler_params=pltpu.CompilerParams(
            dimension_semantics=("parallel", "parallel"),
            vmem_limit_bytes=vmem_limit),
    )(xp, mean_x, std_x, mup, sigp)

    return out2[:rows, :s].reshape(n, c, d, h, w)


def _adain_ref(x, mu_y, sig_y):
    # Pure-JAX reference matching the PyTorch module (torch.std -> ddof=1).
    mean_x = jnp.mean(x, axis=(2, 3, 4), keepdims=True)
    std_x = jnp.std(x, axis=(2, 3, 4), keepdims=True, ddof=1)
    mu = mu_y[:, :, None, None, None]
    sig = sig_y[:, :, None, None, None]
    return (x - mean_x) / (std_x + EPS) * (sig + EPS) + mu


if __name__ == "__main__":
    key = jax.random.PRNGKey(0)
    k1, k2, k3 = jax.random.split(key, 3)

    # 1) Small shapes consistent with the module's forward (5D activations).
    N, C, D, H, W = 2, 4, 8, 8, 8
    x = jax.random.normal(k1, (N, C, D, H, W), dtype=jnp.float32) * 2.0 + 0.5
    mu_y = jax.random.normal(k2, (N, C), dtype=jnp.float32)
    sig_y = jax.random.uniform(k3, (N, C), dtype=jnp.float32, minval=0.5,
                               maxval=1.5)
    out = jax.block_until_ready(adain(x, mu_y, sig_y))
    ref = _adain_ref(x, mu_y, sig_y)
    assert out.shape == ref.shape
    assert jnp.allclose(out, ref, atol=2e-4, rtol=2e-4), "fused path mismatch"

    # 2) Exercise the S-tiled two-pass fallback by forcing a tiny VMEM budget.
    N2, C2, D2, H2, W2 = 2, 8, 8, 8, 16  # rows=16, S=1024
    xb = jax.random.normal(k1, (N2, C2, D2, H2, W2), dtype=jnp.float32) * 1.5 - 0.25
    mub = jax.random.normal(k2, (N2, C2), dtype=jnp.float32)
    sigb = jax.random.uniform(k3, (N2, C2), dtype=jnp.float32, minval=0.5,
                              maxval=1.5)
    outb = jax.block_until_ready(adain(xb, mub, sigb,
                                       vmem_budget_bytes=64 * 1024))
    refb = _adain_ref(xb, mub, sigb)
    assert outb.shape == refb.shape
    assert jnp.allclose(outb, refb, atol=2e-4, rtol=2e-4), "tiled path mismatch"

    # 3) Awkward shapes (rows not a multiple of 8, S not a multiple of 128):
    #    fused path uses full-extent blocks, no HBM padding/slicing copies.
    N3, C3, D3, H3, W3 = 1, 6, 5, 7, 9   # rows=6, S=315
    xc = jax.random.normal(k1, (N3, C3, D3, H3, W3), dtype=jnp.float32) - 0.3
    muc = jax.random.normal(k2, (N3, C3), dtype=jnp.float32)
    sigc = jax.random.uniform(k3, (N3, C3), dtype=jnp.float32, minval=0.5,
                              maxval=1.5)
    outc = jax.block_until_ready(adain(xc, muc, sigc))
    refc = _adain_ref(xc, muc, sigc)
    assert outc.shape == refc.shape
    assert jnp.allclose(outc, refc, atol=2e-4, rtol=2e-4), "ragged path mismatch"

    print("KERNEL_OK")
</pallas_src>

<mosaic_0001>
module attributes {stable_mosaic.version = 11 : i64} {
  func.func @_adain_fused_kernel(%arg0: i32, %arg1: memref<8x512xf32, #tpu.memory_space<vmem>>, %arg2: memref<8x1xf32, #tpu.memory_space<vmem>>, %arg3: memref<8x1xf32, #tpu.memory_space<vmem>>, %arg4: memref<8x512xf32, #tpu.memory_space<vmem>>) attributes {dimension_semantics = [#tpu.dimension_semantics<parallel>], iteration_bounds = array<i64: 1>, scalar_prefetch = 0 : i64, scratch_operands = 0 : i64, tpu.core_type = #tpu.core_type<tc>, window_params = [{transform_indices = @transform_0, window_bounds = array<i64: 8, 512>}, {transform_indices = @transform_1, window_bounds = array<i64: 8, 1>}, {transform_indices = @transform_2, window_bounds = array<i64: 8, 1>}, {transform_indices = @transform_3, window_bounds = array<i64: 8, 512>}]} {
    %c0 = arith.constant 0 : index
    %c0_0 = arith.constant 0 : index
    %0 = vector.load %arg1[%c0, %c0_0] : memref<8x512xf32, #tpu.memory_space<vmem>>, vector<8x512xf32>
    %cst = arith.constant dense<0.000000e+00> : vector<8xf32>
    %1 = vector.multi_reduction <add>, %0, %cst [1] : vector<8x512xf32> to vector<8xf32>
    %2 = vector.shape_cast %1 : vector<8xf32> to vector<8x1xf32>
    %3 = arith.mulf %0, %0 : vector<8x512xf32>
    %cst_1 = arith.constant dense<0.000000e+00> : vector<8xf32>
    %4 = vector.multi_reduction <add>, %3, %cst_1 [1] : vector<8x512xf32> to vector<8xf32>
    %5 = vector.shape_cast %4 : vector<8xf32> to vector<8x1xf32>
    %cst_2 = arith.constant 0.001953125 : f32
    %6 = vector.broadcast %cst_2 : f32 to vector<8x1xf32>
    %7 = arith.mulf %2, %6 : vector<8x1xf32>
    %8 = arith.mulf %7, %2 : vector<8x1xf32>
    %9 = arith.subf %5, %8 : vector<8x1xf32>
    %cst_3 = arith.constant 0.00195694715 : f32
    %10 = vector.broadcast %cst_3 : f32 to vector<8x1xf32>
    %11 = arith.mulf %9, %10 : vector<8x1xf32>
    %cst_4 = arith.constant 0.000000e+00 : f32
    %12 = vector.broadcast %cst_4 : f32 to vector<8x1xf32>
    %13 = arith.maximumf %11, %12 : vector<8x1xf32>
    %14 = math.sqrt %13 : vector<8x1xf32>
    %cst_5 = arith.constant 9.99999993E-9 : f32
    %15 = vector.broadcast %cst_5 : f32 to vector<8x1xf32>
    %16 = arith.addf %14, %15 : vector<8x1xf32>
    %17 = tpu.reciprocal %16 {approx = true} : vector<8x1xf32> -> vector<8x1xf32>
    %18 = arith.mulf %16, %17 : vector<8x1xf32>
    %cst_6 = arith.constant 2.000000e+00 : f32
    %19 = vector.broadcast %cst_6 : f32 to vector<8x1xf32>
    %20 = arith.subf %19, %18 : vector<8x1xf32>
    %21 = arith.mulf %17, %20 : vector<8x1xf32>
    %c0_7 = arith.constant 0 : index
    %c0_8 = arith.constant 0 : index
    %22 = vector.load %arg3[%c0_7, %c0_8] : memref<8x1xf32, #tpu.memory_space<vmem>>, vector<8x1xf32>
    %cst_9 = arith.constant 9.99999993E-9 : f32
    %23 = vector.broadcast %cst_9 : f32 to vector<8x1xf32>
    %24 = arith.addf %22, %23 : vector<8x1xf32>
    %25 = arith.mulf %21, %24 : vector<8x1xf32>
    %26 = vector.broadcast %7 : vector<8x1xf32> to vector<8x512xf32>
    %27 = arith.subf %0, %26 : vector<8x512xf32>
    %28 = vector.broadcast %25 : vector<8x1xf32> to vector<8x512xf32>
    %29 = arith.mulf %27, %28 : vector<8x512xf32>
    %c0_10 = arith.constant 0 : index
    %c0_11 = arith.constant 0 : index
    %30 = vector.load %arg2[%c0_10, %c0_11] : memref<8x1xf32, #tpu.memory_space<vmem>>, vector<8x1xf32>
    %31 = vector.broadcast %30 : vector<8x1xf32> to vector<8x512xf32>
    %32 = arith.addf %29, %31 : vector<8x512xf32>
    %c0_12 = arith.constant 0 : index
    %c0_13 = arith.constant 0 : index
    %33 = vector.load %arg4[%c0_12, %c0_13] : memref<8x512xf32, #tpu.memory_space<vmem>>, vector<8x512xf32>
    tpu.vector_store %arg4[%c0_12, %c0_13], %32 {strides = array<i32>} : memref<8x512xf32, #tpu.memory_space<vmem>>, vector<8x512xf32>,
    return
  }
  func.func @transform_0(%arg0: i32) -> (i32, i32) {
    %c0_i32 = arith.constant 0 : i32
    %c0_i32_0 = arith.constant 0 : i32
    return %arg0, %c0_i32 : i32, i32
  }
  func.func @transform_1(%arg0: i32) -> (i32, i32) {
    %c0_i32 = arith.constant 0 : i32
    %c0_i32_0 = arith.constant 0 : i32
    return %arg0, %c0_i32 : i32, i32
  }
  func.func @transform_2(%arg0: i32) -> (i32, i32) {
    %c0_i32 = arith.constant 0 : i32
    %c0_i32_0 = arith.constant 0 : i32
    return %arg0, %c0_i32 : i32, i32
  }
  func.func @transform_3(%arg0: i32) -> (i32, i32) {
    %c0_i32 = arith.constant 0 : i32
    %c0_i32_0 = arith.constant 0 : i32
    return %arg0, %c0_i32 : i32, i32
  }
}

</mosaic_0001>

<llo_original>
// kernel: adain.1
$region0: #{adain.1}
  #allocation0 [shape = 'u32[]', space=smem, size = 0x4, offset = 0x4, fixed_abs, tag = 'smem constant byte address 0x4 - core index']
  #allocation1 [shape = 'u32[72,128]{1,0:T(1,128)}', space=vmem, size = 0x9000, scoped, tag = 'internal scratch']
  %s0 = inlined_call_operand.vmem [shape: f32[8,512], index: 0, kind: input, shape index: {}]
  %s1 = inlined_call_operand.vmem [shape: f32[8,1], index: 1, kind: input, shape index: {}]
  %s2 = inlined_call_operand.vmem [shape: f32[8,1], index: 2, kind: input, shape index: {}]
  %s3 = inlined_call_operand.vmem [shape: f32[8,512], index: 3, kind: output, shape index: {}]
  %s4 = sld [smem:[#allocation0]]
  $region22: #{adain.1} parent=0
    _
  %s6 = ssub.s32 1, %s4
  %s7 = scalar_select 0, %s6, %s4
  // Predicated region
  $region2: #{adain.1} parent=0 // pred_check
    _
  $region3: #{adain.1} parent=0 // pred_check_branch
    %9 = sbr.rel (0) target = $region5
  $region4: #{adain.1} parent=0 // pred_region
    _
  $region5: #{adain.1} parent=0 // pred_fallthru
    _
  // Predicated region
  $region6: #{adain.1} parent=0 // pred_check
    _
  $region7: #{adain.1} parent=0 // pred_check_branch
    %11 = sbr.rel (0) target = $region9
  $region8: #{adain.1} parent=0 // pred_region
    _
  $region9: #{adain.1} parent=0 // pred_fallthru
    _
  // Predicated region
  $region10: #{adain.1} parent=0 // pred_check
    _
  $region11: #{adain.1} parent=0 // pred_check_branch
    %13 = sbr.rel (0) target = $region13
  $region12: #{adain.1} parent=0 // pred_region
    _
  $region13: #{adain.1} parent=0 // pred_fallthru
    _
  %v14 = vld [vmem:[%s0] sm:$0xff]
  %v15 = vld [vmem:[%s0 + $0x8] sm:$0xff]
  %v16 = vld [vmem:[%s0 + $0x10] sm:$0xff]
  %v17 = vld [vmem:[%s0 + $0x18] sm:$0xff]
  %v18 = vadd.f32 %v14, %v15
  %v19 = vadd.f32 %v18, %v16
  %v20 = vadd.f32 %v19, %v17
  %21 = vadd.xlane.f32.xlu0 %v20
  %v22 = vpop.xlane.xlu0 %21
  %v23 = vmul.f32 %v14, %v14
  %v24 = vmul.f32 %v15, %v15
  %v25 = vmul.f32 %v16, %v16
  %v26 = vmul.f32 %v17, %v17
  %v27 = vadd.f32 %v23, %v24
  %v28 = vadd.f32 %v27, %v25
  %v29 = vadd.f32 %v28, %v26
  %30 = vadd.xlane.f32.xlu0 %v29
  %v31 = vpop.xlane.xlu0 %30
  %v32 = vmul.f32 %v22, 0.001953125
  %v33 = vmul.f32 %v32, %v22
  %v34 = vsub.f32 %v31, %v33
  %v35 = vmul.f32 %v34, 0.0019569471
  %v36 = vmax.f32 %v35, 0.0
  %v37 = vrsqrt.pop %v36
  %v38 = vmul.f32 %v37, %v36
  %v39 = vmul.f32 %v38, %v37
  %v40 = vmul.f32 0.5, %v39
  %v41 = vsub.f32 1.5, %v40
  %v42 = vmul.f32 %v37, %v41
  %v43 = vmul.f32 %v36, %v42
  %vm44 = vcmp.eq.f32.partialorder %v36, inf
  %v45 = vsel %vm44, %v36, %v43
  %vm46 = vcmp.eq.f32.partialorder %v36, 0.0
  %v47 = vand.u32 %v36, 2147483648
  %v48 = vsel %vm46, %v47, %v45
  %v49 = vadd.f32 %v48, 1e-08
  %v50 = vrcp.pop %v49
  %v51 = vmul.f32 %v49, %v50
  %v52 = vsub.f32 2.0, %v51
  %v53 = vmul.f32 %v50, %v52
  %v54 = vld [vmem:[%s2] sm:$0xff]
  %v55 = vadd.f32 %v54, 1e-08
  %v56 = vmul.f32 %v53, %v55
  %v57 = vsub.f32 %v14, %v32
  %v58 = vsub.f32 %v15, %v32
  %v59 = vsub.f32 %v16, %v32
  %v60 = vsub.f32 %v17, %v32
  %62 = vset.pattern.permute.xlu0 0
  %63 = vperm.xlu0 %62, %v56
  %v64 = vpop.permute.xlu0 %63
  %v66 = vmul.f32 %v57, %v64
  %v67 = vmul.f32 %v58, %v64
  %v68 = vmul.f32 %v59, %v64
  %v69 = vmul.f32 %v60, %v64
  %v70 = vld [vmem:[%s1] sm:$0xff]
  %72 = vset.pattern.permute.xlu0 0
  %73 = vperm.xlu0 %72, %v70
  %v74 = vpop.permute.xlu0 %73
  %v76 = vadd.f32 %v66, %v74
  %v77 = vadd.f32 %v67, %v74
  %v78 = vadd.f32 %v68, %v74
  %v79 = vadd.f32 %v69, %v74
  %80 = vst [vmem:[%s3] sm:$0xff] %v76
  %81 = vst [vmem:[%s3 + $0x8] sm:$0xff] %v77
  %82 = vst [vmem:[%s3 + $0x10] sm:$0xff] %v78
  %83 = vst [vmem:[%s3 + $0x18] sm:$0xff] %v79
  // Predicated region
  $region14: #{adain.1} parent=0 // pred_check
    _
  $region15: #{adain.1} parent=0 // pred_check_branch
    %85 = sbr.rel (0) target = $region17
  $region16: #{adain.1} parent=0 // pred_region
    _
  $region17: #{adain.1} parent=0 // pred_fallthru
    _
  // Predicated region
  $region18: #{adain.1} parent=0 // pred_check
    _
  $region19: #{adain.1} parent=0 // pred_check_branch
    %87 = sbr.rel (0) target = $region21
  $region20: #{adain.1} parent=0 // pred_region
    _
  $region21: #{adain.1} parent=0 // pred_fallthru
    _

</llo_original>
